<compile_context>
chip_gen: v6e
topology: v6e:2x2x1
jax: 0.10.0
libtpu: 0.0.40
codegen_flags: <defaults>
</compile_context>

<pallas_src>
import jax
import jax.numpy as jnp
from jax.experimental import pallas as pl
from jax.experimental.pallas import tpu as pltpu

IN_FEATURES = 30
OUT_FEATURES = 20


def _fused_linear_add_relu_add_kernel(x1_ref, w_ref, b_ref, x2_ref, x3_ref, o_ref):
    # v1 = x1 @ W + b   (MXU matmul, f32 accumulation)
    acc = jnp.dot(x1_ref[...], w_ref[...], preferred_element_type=jnp.float32)
    # v2 = v1 + x2 ; v3 = relu(v2) ; v4 = v3 + x3   (VPU elementwise)
    v2 = acc + b_ref[...] + x2_ref[...]
    o_ref[...] = (jnp.maximum(v2, 0.0) + x3_ref[...]).astype(o_ref.dtype)


def _pallas_forward(x1, w_t, b, x2, x3, *, block_rows, alias_x3_into_out=False):
    batch = x1.shape[0]
    grid = (pl.cdiv(batch, block_rows),)

    cost = pl.CostEstimate(
        flops=2 * batch * IN_FEATURES * OUT_FEATURES,
        transcendentals=0,
        bytes_accessed=4 * batch * (IN_FEATURES + 3 * OUT_FEATURES)
        + 4 * (IN_FEATURES * OUT_FEATURES + OUT_FEATURES),
    )

    extra_kwargs = {}
    if alias_x3_into_out:
        # x3 is input index 4; reuse its HBM buffer for the output.
        extra_kwargs["input_output_aliases"] = {4: 0}

    return pl.pallas_call(
        _fused_linear_add_relu_add_kernel,
        out_shape=jax.ShapeDtypeStruct((batch, OUT_FEATURES), x1.dtype),
        grid=grid,
        in_specs=[
            # x1 tile: (TB, 30) — feature dim at full extent (legal block spec).
            pl.BlockSpec((block_rows, IN_FEATURES), lambda i: (i, 0)),
            # Weight (30, 20): constant index -> VMEM-resident across steps.
            pl.BlockSpec((IN_FEATURES, OUT_FEATURES), lambda i: (0, 0)),
            # Bias (1, 20): legal only because it equals the full array extent.
            pl.BlockSpec((1, OUT_FEATURES), lambda i: (0, 0)),
            # x2 / x3 tiles: (TB, 20).
            pl.BlockSpec((block_rows, OUT_FEATURES), lambda i: (i, 0)),
            pl.BlockSpec((block_rows, OUT_FEATURES), lambda i: (i, 0)),
        ],
        out_specs=pl.BlockSpec((block_rows, OUT_FEATURES), lambda i: (i, 0)),
        compiler_params=pltpu.CompilerParams(
            dimension_semantics=("parallel",),
        ),
        cost_estimate=cost,
        **extra_kwargs,
    )(x1, w_t, b, x2, x3)


def _choose_block_rows(batch, *, max_rows=2048, target_steps=4):
    """Batch-derived tile: ~target_steps grid steps, multiple of 8, capped.

    Rounding cdiv(B, steps) up to 8 keeps the final block nearly full (no tiny
    ragged last step), and target_steps>=2 keeps the grid length >=2 so the
    'parallel' batch axis can shard across both v7x TensorCores.
    """
    tb = pl.cdiv(batch, target_steps)
    tb = min(tb, max_rows)
    tb = max(8, ((tb + 7) // 8) * 8)
    return tb


def model_forward(x1, w_t, b, x2, x3, *, min_pallas_rows=4096,
                  force_pallas=False, alias_x3_into_out=False):
    """relu(x1 @ w_t + b + x2) + x3, fused.

    Small batches (the common case for this module, B=1) skip Pallas entirely:
    launch overhead would dominate a ~1 kFLOP / few-hundred-byte problem and
    XLA fuses the chain fine.  Large batches run the batch-tiled Pallas kernel.
    """
    assert x1.ndim == 2 and x1.shape[1] == IN_FEATURES, x1.shape
    assert w_t.shape == (IN_FEATURES, OUT_FEATURES), w_t.shape
    assert b.shape == (1, OUT_FEATURES), b.shape
    assert x2.shape == (x1.shape[0], OUT_FEATURES), x2.shape
    assert x3.shape == (x1.shape[0], OUT_FEATURES), x3.shape

    batch = x1.shape[0]
    if batch < min_pallas_rows and not force_pallas:
        return jnp.maximum(x1 @ w_t + b + x2, 0.0) + x3

    tb = _choose_block_rows(batch)
    return _pallas_forward(x1, w_t, b, x2, x3, block_rows=tb,
                           alias_x3_into_out=alias_x3_into_out)


def _reference(x1, w_t, b, x2, x3):
    return jnp.maximum(x1 @ w_t + b + x2, 0.0) + x3


if __name__ == "__main__":
    key = jax.random.PRNGKey(0)
    k_x1, k_x2, k_x3, k_w, k_b, k_s1, k_s2, k_s3, k_r1, k_r2, k_r3 = (
        jax.random.split(key, 11))

    # Deterministic Linear(30, 20) parameters (PyTorch-style uniform init).
    bound = 1.0 / (IN_FEATURES ** 0.5)
    w = jax.random.uniform(k_w, (OUT_FEATURES, IN_FEATURES),
                           minval=-bound, maxval=bound, dtype=jnp.float32)
    b = jax.random.uniform(k_b, (1, OUT_FEATURES),
                           minval=-bound, maxval=bound, dtype=jnp.float32)
    w_t = w.T  # (30, 20) so the kernel computes x1 @ w_t

    # --- Module-spec shapes (batch=1): takes the XLA-fused fallback path. ---
    sx1 = jax.random.normal(k_s1, (1, IN_FEATURES), dtype=jnp.float32)
    sx2 = jax.random.normal(k_s2, (1, OUT_FEATURES), dtype=jnp.float32)
    sx3 = jax.random.normal(k_s3, (1, OUT_FEATURES), dtype=jnp.float32)
    small = model_forward(sx1, w_t, b, sx2, sx3)
    jax.block_until_ready(small)
    assert small.shape == (1, OUT_FEATURES)
    assert jnp.allclose(small, _reference(sx1, w_t, b, sx2, sx3),
                        atol=1e-5, rtol=1e-5)

    # --- Pallas path, forced so it is exercised at a small test batch.    ---
    # batch=256 -> block_rows=64, grid=(4,): >=2 steps (v7x megacore-friendly).
    batch = 256
    x1 = jax.random.normal(k_x1, (batch, IN_FEATURES), dtype=jnp.float32)
    x2 = jax.random.normal(k_x2, (batch, OUT_FEATURES), dtype=jnp.float32)
    x3 = jax.random.normal(k_x3, (batch, OUT_FEATURES), dtype=jnp.float32)
    out = model_forward(x1, w_t, b, x2, x3, force_pallas=True)
    jax.block_until_ready(out)
    assert out.shape == (batch, OUT_FEATURES)
    assert jnp.allclose(out, _reference(x1, w_t, b, x2, x3),
                        atol=1e-5, rtol=1e-5)

    # --- Pallas path with a ragged batch (masked final output block).     ---
    rbatch = 100  # block_rows=32, grid=(4,), last block 4 rows masked.
    rx1 = jax.random.normal(k_r1, (rbatch, IN_FEATURES), dtype=jnp.float32)
    rx2 = jax.random.normal(k_r2, (rbatch, OUT_FEATURES), dtype=jnp.float32)
    rx3 = jax.random.normal(k_r3, (rbatch, OUT_FEATURES), dtype=jnp.float32)
    rout = model_forward(rx1, w_t, b, rx2, rx3, force_pallas=True)
    jax.block_until_ready(rout)
    assert rout.shape == (rbatch, OUT_FEATURES)
    assert jnp.allclose(rout, _reference(rx1, w_t, b, rx2, rx3),
                        atol=1e-5, rtol=1e-5)

    print("KERNEL_OK")
</pallas_src>

<mosaic_0001>
module attributes {stable_mosaic.version = 11 : i64} {
  func.func @_fused_linear_add_relu_add_kernel(%arg0: i32, %arg1: memref<64x30xf32, #tpu.memory_space<vmem>>, %arg2: memref<30x20xf32, #tpu.memory_space<vmem>>, %arg3: memref<1x20xf32, #tpu.memory_space<vmem>>, %arg4: memref<64x20xf32, #tpu.memory_space<vmem>>, %arg5: memref<64x20xf32, #tpu.memory_space<vmem>>, %arg6: memref<64x20xf32, #tpu.memory_space<vmem>>) attributes {dimension_semantics = [#tpu.dimension_semantics<parallel>], iteration_bounds = array<i64: 4>, scalar_prefetch = 0 : i64, scratch_operands = 0 : i64, tpu.core_type = #tpu.core_type<tc>, window_params = [{transform_indices = @transform_0, window_bounds = array<i64: 64, 30>}, {pipeline_mode = #tpu.pipeline_mode<synchronous>, transform_indices = @transform_1, window_bounds = array<i64: 30, 20>}, {pipeline_mode = #tpu.pipeline_mode<synchronous>, transform_indices = @transform_2, window_bounds = array<i64: 1, 20>}, {transform_indices = @transform_3, window_bounds = array<i64: 64, 20>}, {transform_indices = @transform_4, window_bounds = array<i64: 64, 20>}, {transform_indices = @transform_5, window_bounds = array<i64: 64, 20>}]} {
    %c0 = arith.constant 0 : index
    %c0_0 = arith.constant 0 : index
    %0 = vector.load %arg1[%c0, %c0_0] : memref<64x30xf32, #tpu.memory_space<vmem>>, vector<64x30xf32>
    %c0_1 = arith.constant 0 : index
    %c0_2 = arith.constant 0 : index
    %1 = vector.load %arg2[%c0_1, %c0_2] : memref<30x20xf32, #tpu.memory_space<vmem>>, vector<30x20xf32>
    %cst = arith.constant dense<0.000000e+00> : vector<64x20xf32>
    %2 = tpu.matmul %0, %1, %cst {dimension_numbers = #tpu.dot_dimension_numbers<[1], [0], [0], [1], [0, 0, 1, 1], [], []>} : vector<64x30xf32>, vector<30x20xf32>, vector<64x20xf32> -> vector<64x20xf32>
    %c0_3 = arith.constant 0 : index
    %c0_4 = arith.constant 0 : index
    %3 = vector.load %arg3[%c0_3, %c0_4] : memref<1x20xf32, #tpu.memory_space<vmem>>, vector<1x20xf32>
    %4 = vector.broadcast %3 : vector<1x20xf32> to vector<64x20xf32>
    %5 = arith.addf %2, %4 : vector<64x20xf32>
    %c0_5 = arith.constant 0 : index
    %c0_6 = arith.constant 0 : index
    %6 = vector.load %arg4[%c0_5, %c0_6] : memref<64x20xf32, #tpu.memory_space<vmem>>, vector<64x20xf32>
    %7 = arith.addf %5, %6 : vector<64x20xf32>
    %cst_7 = arith.constant 0.000000e+00 : f32
    %8 = vector.broadcast %cst_7 : f32 to vector<64x20xf32>
    %9 = arith.maximumf %7, %8 : vector<64x20xf32>
    %c0_8 = arith.constant 0 : index
    %c0_9 = arith.constant 0 : index
    %10 = vector.load %arg5[%c0_8, %c0_9] : memref<64x20xf32, #tpu.memory_space<vmem>>, vector<64x20xf32>
    %11 = arith.addf %9, %10 : vector<64x20xf32>
    %c0_10 = arith.constant 0 : index
    %c0_11 = arith.constant 0 : index
    %12 = vector.load %arg6[%c0_10, %c0_11] : memref<64x20xf32, #tpu.memory_space<vmem>>, vector<64x20xf32>
    tpu.vector_store %arg6[%c0_10, %c0_11], %11 {strides = array<i32>} : memref<64x20xf32, #tpu.memory_space<vmem>>, vector<64x20xf32>,
    return
  }
  func.func @transform_0(%arg0: i32) -> (i32, i32) {
    %c0_i32 = arith.constant 0 : i32
    %c0_i32_0 = arith.constant 0 : i32
    return %arg0, %c0_i32 : i32, i32
  }
  func.func @transform_1(%arg0: i32) -> (i32, i32) {
    %c0_i32 = arith.constant 0 : i32
    %c0_i32_0 = arith.constant 0 : i32
    %c0_i32_1 = arith.constant 0 : i32
    return %c0_i32, %c0_i32_0 : i32, i32
  }
  func.func @transform_2(%arg0: i32) -> (i32, i32) {
    %c0_i32 = arith.constant 0 : i32
    %c0_i32_0 = arith.constant 0 : i32
    %c0_i32_1 = arith.constant 0 : i32
    return %c0_i32, %c0_i32_0 : i32, i32
  }
  func.func @transform_3(%arg0: i32) -> (i32, i32) {
    %c0_i32 = arith.constant 0 : i32
    %c0_i32_0 = arith.constant 0 : i32
    return %arg0, %c0_i32 : i32, i32
  }
  func.func @transform_4(%arg0: i32) -> (i32, i32) {
    %c0_i32 = arith.constant 0 : i32
    %c0_i32_0 = arith.constant 0 : i32
    return %arg0, %c0_i32 : i32, i32
  }
  func.func @transform_5(%arg0: i32) -> (i32, i32) {
    %c0_i32 = arith.constant 0 : i32
    %c0_i32_0 = arith.constant 0 : i32
    return %arg0, %c0_i32 : i32, i32
  }
}

</mosaic_0001>

<llo_original>
// kernel: tpu_custom_call.1
$region0: #{tpu_custom_call.1}
  #allocation0 [shape = 'u32[]', space=smem, size = 0x4, offset = 0x4, fixed_abs, tag = 'smem constant byte address 0x4 - core index']
  #allocation1 [shape = 'u32[144,128]{1,0:T(1,128)}', space=vmem, size = 0x12000, scoped, tag = 'internal scratch']
  %s0 = inlined_call_operand.vmem [shape: f32[256,30], index: 0, kind: input, shape index: {}]
  %s1 = inlined_call_operand.vmem [shape: f32[30,20], index: 1, kind: input, shape index: {}]
  %s2 = inlined_call_operand.vmem [shape: f32[1,20], index: 2, kind: input, shape index: {}]
  %s3 = inlined_call_operand.vmem [shape: f32[256,20], index: 3, kind: input, shape index: {}]
  %s4 = inlined_call_operand.vmem [shape: f32[256,20], index: 4, kind: input, shape index: {}]
  %s5 = inlined_call_operand.vmem [shape: f32[256,20], index: 5, kind: output, shape index: {}]
  %s6 = sld [smem:[#allocation0]]
  $region53: #{tpu_custom_call.1} parent=0
    _
  %s8 = ssub.s32 1, %s6
  %s9 = scalar_select 0, %s8, %s6
  loop: start=0, step=1, limit=6
  $region2: #{tpu_custom_call.1} parent=0 // loop_pre_header
    _
  $region3: #{tpu_custom_call.1} parent=0 // loop_header
    %s11 = sphi 0, %s15
    %p12 = scmp.ge.s32.totalorder %s11, 6
    %s21 = sphi 0, %s23
    %s24 = sphi 0, %s21
    %s25 = sphi 0, %s24
    %s41 = sphi 0, %s25
    %s45 = sphi 0, %s45
    %s47 = sphi 0, %s45
    %s48 = sphi 0, %s47
    %s62 = sphi 0, %s48
    %s66 = sphi 0, %s66
    %s68 = sphi 0, %s66
    %s69 = sphi 0, %s68
    %s83 = sphi 0, %s69
    %s89 = sphi 0, %s91
    %s92 = sphi 0, %s89
    %s93 = sphi 0, %s92
    %s109 = sphi 0, %s93
    %s115 = sphi 0, %s117
    %s118 = sphi 0, %s115
    %s119 = sphi 0, %s118
    %s135 = sphi 0, %s119
    %s141 = sphi 0, %s143
    %s144 = sphi 0, %s141
    %s145 = sphi 0, %s144
    %s161 = sphi 0, %s145
  $region4: #{tpu_custom_call.1} parent=0 // loop_header_branch
    %14 = sbr.rel (%p12) target = $region8
  $region5: #{tpu_custom_call.1} parent=0 // loop_body
    %s16 = ssub.s32 %s11, 1
    %s17 = ssub.s32 %s11, 2
    %s18 = sadd.s32 %s11, 1
    %s19 = ssub.s32 %s11, %s18
    %p20 = scmp.eq.s32.totalorder %s19, 0
    %s22 = sadd.s32 %s21, 1
    %s23 = scalar_select %p20, %s21, %s22
    %p26 = pneg %p20
    %p27 = scmp.eq.s32.totalorder %s11, 3
    %p28 = por %p26, %p27
    %p29 = scmp.ne.s32.totalorder %s21, %s24
    %p30 = scmp.eq.s32.totalorder %s11, 0
    %p31 = por %p29, %p30
    %p32 = scmp.ne.s32.totalorder %s21, %s24
    %p33 = scmp.eq.s32.totalorder %s16, 3
    %p34 = por %p32, %p33
    %p35 = scmp.ne.s32.totalorder %s24, %s25
    %p36 = scmp.eq.s32.totalorder %s16, 0
    %p37 = por %p35, %p36
    %p38 = scmp.ne.s32.totalorder %s24, %s25
    %p39 = scmp.eq.s32.totalorder %s17, 3
    %p40 = por %p38, %p39
    %p42 = scmp.ne.s32.totalorder %s25, %s41
    %p43 = scmp.eq.s32.totalorder %s17, 0
    %p44 = por %p42, %p43
    %s46 = sadd.s32 %s45, 1
    %p49 = scmp.eq.s32.totalorder %s11, 3
    %p50 = scmp.ne.s32.totalorder %s45, %s47
    %p51 = scmp.eq.s32.totalorder %s11, 0
    %p52 = por %p50, %p51
    %p53 = scmp.ne.s32.totalorder %s45, %s47
    %p54 = scmp.eq.s32.totalorder %s16, 3
    %p55 = por %p53, %p54
    %p56 = scmp.ne.s32.totalorder %s47, %s48
    %p57 = scmp.eq.s32.totalorder %s16, 0
    %p58 = por %p56, %p57
    %p59 = scmp.ne.s32.totalorder %s47, %s48
    %p60 = scmp.eq.s32.totalorder %s17, 3
    %p61 = por %p59, %p60
    %p63 = scmp.ne.s32.totalorder %s48, %s62
    %p64 = scmp.eq.s32.totalorder %s17, 0
    %p65 = por %p63, %p64
    %s67 = sadd.s32 %s66, 1
    %p70 = scmp.eq.s32.totalorder %s11, 3
    %p71 = scmp.ne.s32.totalorder %s66, %s68
    %p72 = scmp.eq.s32.totalorder %s11, 0
    %p73 = por %p71, %p72
    %p74 = scmp.ne.s32.totalorder %s66, %s68
    %p75 = scmp.eq.s32.totalorder %s16, 3
    %p76 = por %p74, %p75
    %p77 = scmp.ne.s32.totalorder %s68, %s69
    %p78 = scmp.eq.s32.totalorder %s16, 0
    %p79 = por %p77, %p78
    %p80 = scmp.ne.s32.totalorder %s68, %s69
    %p81 = scmp.eq.s32.totalorder %s17, 3
    %p82 = por %p80, %p81
    %p84 = scmp.ne.s32.totalorder %s69, %s83
    %p85 = scmp.eq.s32.totalorder %s17, 0
    %p86 = por %p84, %p85
    %s87 = ssub.s32 %s11, %s18
    %p88 = scmp.eq.s32.totalorder %s87, 0
    %s90 = sadd.s32 %s89, 1
    %s91 = scalar_select %p88, %s89, %s90
    %p94 = pneg %p88
    %p95 = scmp.eq.s32.totalorder %s11, 3
    %p96 = por %p94, %p95
    %p97 = scmp.ne.s32.totalorder %s89, %s92
    %p98 = scmp.eq.s32.totalorder %s11, 0
    %p99 = por %p97, %p98
    %p100 = scmp.ne.s32.totalorder %s89, %s92
    %p101 = scmp.eq.s32.totalorder %s16, 3
    %p102 = por %p100, %p101
    %p103 = scmp.ne.s32.totalorder %s92, %s93
    %p104 = scmp.eq.s32.totalorder %s16, 0
    %p105 = por %p103, %p104
    %p106 = scmp.ne.s32.totalorder %s92, %s93
    %p107 = scmp.eq.s32.totalorder %s17, 3
    %p108 = por %p106, %p107
    %p110 = scmp.ne.s32.totalorder %s93, %s109
    %p111 = scmp.eq.s32.totalorder %s17, 0
    %p112 = por %p110, %p111
    %s113 = ssub.s32 %s11, %s18
    %p114 = scmp.eq.s32.totalorder %s113, 0
    %s116 = sadd.s32 %s115, 1
    %s117 = scalar_select %p114, %s115, %s116
    %p120 = pneg %p114
    %p121 = scmp.eq.s32.totalorder %s11, 3
    %p122 = por %p120, %p121
    %p123 = scmp.ne.s32.totalorder %s115, %s118
    %p124 = scmp.eq.s32.totalorder %s11, 0
    %p125 = por %p123, %p124
    %p126 = scmp.ne.s32.totalorder %s115, %s118
    %p127 = scmp.eq.s32.totalorder %s16, 3
    %p128 = por %p126, %p127
    %p129 = scmp.ne.s32.totalorder %s118, %s119
    %p130 = scmp.eq.s32.totalorder %s16, 0
    %p131 = por %p129, %p130
    %p132 = scmp.ne.s32.totalorder %s118, %s119
    %p133 = scmp.eq.s32.totalorder %s17, 3
    %p134 = por %p132, %p133
    %p136 = scmp.ne.s32.totalorder %s119, %s135
    %p137 = scmp.eq.s32.totalorder %s17, 0
    %p138 = por %p136, %p137
    %s139 = ssub.s32 %s11, %s18
    %p140 = scmp.eq.s32.totalorder %s139, 0
    %s142 = sadd.s32 %s141, 1
    %s143 = scalar_select %p140, %s141, %s142
    %p146 = pneg %p140
    %p147 = scmp.eq.s32.totalorder %s11, 3
    %p148 = por %p146, %p147
    %p149 = scmp.ne.s32.totalorder %s141, %s144
    %p150 = scmp.eq.s32.totalorder %s11, 0
    %p151 = por %p149, %p150
    %p152 = scmp.ne.s32.totalorder %s141, %s144
    %p153 = scmp.eq.s32.totalorder %s16, 3
    %p154 = por %p152, %p153
    %p155 = scmp.ne.s32.totalorder %s144, %s145
    %p156 = scmp.eq.s32.totalorder %s16, 0
    %p157 = por %p155, %p156
    %p158 = scmp.ne.s32.totalorder %s144, %s145
    %p159 = scmp.eq.s32.totalorder %s17, 3
    %p160 = por %p158, %p159
    %p162 = scmp.ne.s32.totalorder %s145, %s161
    %p163 = scmp.eq.s32.totalorder %s17, 0
    %p164 = por %p162, %p163
    %p165 = scmp.le.s32.totalorder 1, %s11
    %p166 = scmp.lt.s32.totalorder %s11, 5
    %p167 = pnand %p165, %p166
    %p168 = pneg %p167
    // Predicated region
    $region9: #{tpu_custom_call.1} parent=5 // pred_check
      _
    $region10: #{tpu_custom_call.1} parent=5 // pred_check_branch
      %170 = sbr.rel (%p167) target = $region12
    $region11: #{tpu_custom_call.1} parent=5 // pred_region
      %s171 = ssub.s32 %s11, 1
      // Predicated region
      $region13: #{tpu_custom_call.1} parent=11 // pred_check
        %p172 = pneg %p58
      $region14: #{tpu_custom_call.1} parent=11 // pred_check_branch
        %174 = sbr.rel (%p172) target = $region16
      $region15: #{tpu_custom_call.1} parent=11 // pred_region
        _
      $region16: #{tpu_custom_call.1} parent=11 // pred_fallthru
        _
      // Predicated region
      $region17: #{tpu_custom_call.1} parent=11 // pred_check
        %p175 = pneg %p79
      $region18: #{tpu_custom_call.1} parent=11 // pred_check_branch
        %177 = sbr.rel (%p175) target = $region20
      $region19: #{tpu_custom_call.1} parent=11 // pred_region
        _
      $region20: #{tpu_custom_call.1} parent=11 // pred_fallthru
        _
    $region12: #{tpu_custom_call.1} parent=5 // pred_fallthru
      _
    %p178 = scmp.lt.s32.totalorder %s11, 4
    // Predicated region
    $region21: #{tpu_custom_call.1} parent=5 // pred_check
      %p179 = pneg %p178
    $region22: #{tpu_custom_call.1} parent=5 // pred_check_branch
      %181 = sbr.rel (%p179) target = $region24
    $region23: #{tpu_custom_call.1} parent=5 // pred_region
      // Predicated region
      $region25: #{tpu_custom_call.1} parent=23 // pred_check
        %p182 = pneg %p31
      $region26: #{tpu_custom_call.1} parent=23 // pred_check_branch
        %184 = sbr.rel (%p182) target = $region28
      $region27: #{tpu_custom_call.1} parent=23 // pred_region
        %s185 = smul.u32 8, %s11
        %p186 = scmp.lt.s32.totalorder %s185, 31
        %s187 = scalar_select %p186, %s185, 31
        %s188 = smul.addr %s187, 8
        %s189 = scalar_lea.vmem %s0, %s188
        %s190 = smul.u32 8, %s11
      $region28: #{tpu_custom_call.1} parent=23 // pred_fallthru
        _
      // Predicated region
      $region29: #{tpu_custom_call.1} parent=23 // pred_check
        %p191 = pneg %p99
      $region30: #{tpu_custom_call.1} parent=23 // pred_check_branch
        %193 = sbr.rel (%p191) target = $region32
      $region31: #{tpu_custom_call.1} parent=23 // pred_region
        %s194 = smul.u32 8, %s11
        %p195 = scmp.lt.s32.totalorder %s194, 31
        %s196 = scalar_select %p195, %s194, 31
        %s197 = smul.addr %s196, 8
        %s198 = scalar_lea.vmem %s3, %s197
        %s199 = smul.u32 8, %s11
      $region32: #{tpu_custom_call.1} parent=23 // pred_fallthru
        _
      // Predicated region
      $region33: #{tpu_custom_call.1} parent=23 // pred_check
        %p200 = pneg %p125
      $region34: #{tpu_custom_call.1} parent=23 // pred_check_branch
        %202 = sbr.rel (%p200) target = $region36
      $region35: #{tpu_custom_call.1} parent=23 // pred_region
        %s203 = smul.u32 8, %s11
        %p204 = scmp.lt.s32.totalorder %s203, 31
        %s205 = scalar_select %p204, %s203, 31
        %s206 = smul.addr %s205, 8
        %s207 = scalar_lea.vmem %s4, %s206
        %s208 = smul.u32 8, %s11
      $region36: #{tpu_custom_call.1} parent=23 // pred_fallthru
        _
    $region24: #{tpu_custom_call.1} parent=5 // pred_fallthru
      _
    %p209 = scmp.le.s32.totalorder 1, %s11
    %p210 = scmp.lt.s32.totalorder %s11, 5
    %p211 = pnand %p209, %p210
    %p212 = pneg %p211
    // Predicated region
    $region37: #{tpu_custom_call.1} parent=5 // pred_check
      _
    $region38: #{tpu_custom_call.1} parent=5 // pred_check_branch
      %214 = sbr.rel (%p211) target = $region40
    $region39: #{tpu_custom_call.1} parent=5 // pred_region
      %s215 = ssub.s32 %s11, 1
      %s216 = smul.u32 8, %s16
      %p217 = scmp.lt.s32.totalorder %s216, 31
      %s218 = scalar_select %p217, %s216, 31
      %s219 = smul.addr %s218, 8
      %s220 = scalar_lea.vmem %s0, %s219
      %p221 = pneg %p37
      %p222 = pneg %p34
      %p223 = pneg %p58
      %p224 = pneg %p55
      %p225 = pneg %p79
      %p226 = pneg %p76
      %s227 = smul.u32 8, %s16
      %p228 = scmp.lt.s32.totalorder %s227, 31
      %s229 = scalar_select %p228, %s227, 31
      %s230 = smul.addr %s229, 8
      %s231 = scalar_lea.vmem %s3, %s230
      %p232 = pneg %p105
      %p233 = pneg %p102
      %s234 = smul.u32 8, %s16
      %p235 = scmp.lt.s32.totalorder %s234, 31
      %s236 = scalar_select %p235, %s234, 31
      %s237 = smul.addr %s236, 8
      %s238 = scalar_lea.vmem %s4, %s237
      %p239 = pneg %p131
      %p240 = pneg %p128
      %p241 = pneg %p157
      %p242 = pneg %p154
      %s243 = smul.u32 8, %s16
      %p244 = scmp.lt.s32.totalorder %s243, 31
      %s245 = scalar_select %p244, %s243, 31
      %s246 = smul.addr %s245, 8
      %s247 = scalar_lea.vmem %s5, %s246
      %s248 = smul.u32 8, %s16
      %p249 = scmp.lt.s32.totalorder %s248, 31
      %s250 = scalar_select %p249, %s248, 31
      %s251 = smul.addr %s250, 8
      %s252 = scalar_lea.vmem %s0, %s251
      %s253 = smul.u32 8, %s16
      %s254 = smul.u32 8, %s16
      %p255 = scmp.lt.s32.totalorder %s254, 31
      %s256 = scalar_select %p255, %s254, 31
      %s257 = smul.addr %s256, 8
      %s258 = scalar_lea.vmem %s3, %s257
      %s259 = smul.u32 8, %s16
      %s260 = smul.u32 8, %s16
      %p261 = scmp.lt.s32.totalorder %s260, 31
      %s262 = scalar_select %p261, %s260, 31
      %s263 = smul.addr %s262, 8
      %s264 = scalar_lea.vmem %s4, %s263
      %s265 = smul.u32 8, %s16
      %s266 = smul.u32 8, %s16
      %p267 = scmp.lt.s32.totalorder %s266, 31
      %s268 = scalar_select %p267, %s266, 31
      %s269 = smul.addr %s268, 8
      %s270 = scalar_lea.vmem %s5, %s269
      %s271 = smul.u32 8, %s16
      %v272 = vld [vmem:[%s252] sm:$0xff]
      %v273 = vld [vmem:[%s252 + $0x8] sm:$0xff]
      %v274 = vld [vmem:[%s252 + $0x10] sm:$0xff]
      %v275 = vld [vmem:[%s252 + $0x18] sm:$0xff]
      %v276 = vld [vmem:[%s252 + $0x20] sm:$0xff]
      %v277 = vld [vmem:[%s252 + $0x28] sm:$0xff]
      %v278 = vld [vmem:[%s252 + $0x30] sm:$0xff]
      %v279 = vld [vmem:[%s252 + $0x38] sm:$0xff]
      %v280 = vld [vmem:[%s1] sm:$0xff]
      %v281 = vld [vmem:[%s1 + $0x8] sm:$0xff]
      %v282 = vld [vmem:[%s1 + $0x10] sm:$0xff]
      %v283 = vld [vmem:[%s1 + $0x18] sm:$0x3f]
      %v284 = vld [vmem:[%s2] sm:$0x1]
      %v286 = vlaneseq
      %v287 = vshrl.u32 %v286, 7
      %v288 = vsub.s32 0, %v287
      %v289 = vrot.slane %v284, %v288
      %vm291 = vcmask 244736
      %v293 = vsel %vm291, %v272, 0
      %v296 = vsel %vm291, %v273, 0
      %v299 = vsel %vm291, %v274, 0
      %v302 = vsel %vm291, %v275, 0
      %v305 = vsel %vm291, %v276, 0
      %v308 = vsel %vm291, %v277, 0
      %v311 = vsel %vm291, %v278, 0
      %v314 = vsel %vm291, %v279, 0
      %vm316 = vcmask 1045504
      %v318 = vsel %vm316, %v283, 0
      %320 = vmatprep.subr.mxu0 0.0
      %321 = vmatpush1.msra.mxu0 0.0
      %322 = vmatprep.subr.mxu0 0.0
      %323 = vmatpush1.msra.mxu0 0.0
      %324 = vmatprep.subr.mxu0 0.0
      %325 = vmatpush1.msra.mxu0 0.0
      %326 = vmatprep.subr.mxu0 0.0
      %327 = vmatpush1.msra.mxu0 0.0
      %328 = vmatprep.subr.mxu0 0.0
      %329 = vmatpush1.msra.mxu0 0.0
      %330 = vmatprep.subr.mxu0 0.0
      %331 = vmatpush1.msra.mxu0 0.0
      %332 = vmatprep.subr.mxu0 0.0
      %333 = vmatpush1.msra.mxu0 0.0
      %334 = vmatprep.subr.mxu0 0.0
      %335 = vmatpush1.msra.mxu0 0.0
      %336 = vmatprep.subr.mxu0 0.0
      %337 = vmatpush1.msra.mxu0 0.0
      %338 = vmatprep.subr.mxu0 0.0
      %339 = vmatpush1.msra.mxu0 0.0
      %340 = vmatprep.subr.mxu0 0.0
      %341 = vmatpush1.msra.mxu0 0.0
      %342 = vmatprep.subr.mxu0 0.0
      %343 = vmatpush1.msra.mxu0 0.0
      %344 = vmatprep.subr.mxu0 0.0
      %345 = vmatpush1.msra.mxu0 %v318
      %346 = vmatprep.subr.mxu0 0.0
      %347 = vmatpush1.msra.mxu0 %v282
      %348 = vmatprep.subr.mxu0 0.0
      %349 = vmatpush1.msra.mxu0 %v281
      %350 = vmatprep.subr.mxu0 0.0
      %351 = vmatpush1.msra.mxu0 %v280
      %352 = vmatprep.subr.mxu0 0.0
      %353 = vmatpush2.msra.mxu0 0.0
      %354 = vmatprep.subr.mxu0 0.0
      %355 = vmatpush2.msra.mxu0 0.0
      %356 = vmatprep.subr.mxu0 0.0
      %357 = vmatpush2.msra.mxu0 0.0
      %358 = vmatprep.subr.mxu0 0.0
      %359 = vmatpush2.msra.mxu0 0.0
      %360 = vmatprep.subr.mxu0 0.0
      %361 = vmatpush2.msra.mxu0 0.0
      %362 = vmatprep.subr.mxu0 0.0
      %363 = vmatpush2.msra.mxu0 0.0
      %364 = vmatprep.subr.mxu0 0.0
      %365 = vmatpush2.msra.mxu0 0.0
      %366 = vmatprep.subr.mxu0 0.0
      %367 = vmatpush2.msra.mxu0 0.0
      %368 = vmatprep.subr.mxu0 0.0
      %369 = vmatpush2.msra.mxu0 0.0
      %370 = vmatprep.subr.mxu0 0.0
      %371 = vmatpush2.msra.mxu0 0.0
      %372 = vmatprep.subr.mxu0 0.0
      %373 = vmatpush2.msra.mxu0 0.0
      %374 = vmatprep.subr.mxu0 0.0
      %375 = vmatpush2.msra.mxu0 0.0
      %376 = vmatprep.subr.mxu0 0.0
      %377 = vmatpush2.msra.mxu0 0.0
      %378 = vmatprep.subr.mxu0 0.0
      %379 = vmatpush2.msra.mxu0 0.0
      %380 = vmatprep.subr.mxu0 0.0
      %381 = vmatpush2.msra.mxu0 0.0
      %382 = vmatprep.subr.mxu0 0.0
      %383 = vmatpush2.msra.mxu0 0.0
      %384 = vmatprep.mubr.f32.mxu0 0.0
      %385 = vmatmul.mubr.f32.gmra.mxu0 %v293
      %v386 = vpop.f32.mrf.mxu0
      %v387 = vadd.f32 %v289, %v386
      %v388 = vpop.f32.mrf.mxu0
      %389 = vmatprep.mubr.f32.mxu0 0.0
      %390 = vmatmul.mubr.f32.gmra.mxu0 %v296
      %v391 = vpop.f32.mrf.mxu0
      %v392 = vadd.f32 %v289, %v391
      %v393 = vpop.f32.mrf.mxu0
      %394 = vmatprep.mubr.f32.mxu0 0.0
      %395 = vmatmul.mubr.f32.gmra.mxu0 %v299
      %v396 = vpop.f32.mrf.mxu0
      %v397 = vadd.f32 %v289, %v396
      %v398 = vpop.f32.mrf.mxu0
      %399 = vmatprep.mubr.f32.mxu0 0.0
      %400 = vmatmul.mubr.f32.gmra.mxu0 %v302
      %v401 = vpop.f32.mrf.mxu0
      %v402 = vadd.f32 %v289, %v401
      %v403 = vpop.f32.mrf.mxu0
      %404 = vmatprep.mubr.f32.mxu0 0.0
      %405 = vmatmul.mubr.f32.gmra.mxu0 %v305
      %v406 = vpop.f32.mrf.mxu0
      %v407 = vadd.f32 %v289, %v406
      %v408 = vpop.f32.mrf.mxu0
      %409 = vmatprep.mubr.f32.mxu0 0.0
      %410 = vmatmul.mubr.f32.gmra.mxu0 %v308
      %v411 = vpop.f32.mrf.mxu0
      %v412 = vadd.f32 %v289, %v411
      %v413 = vpop.f32.mrf.mxu0
      %414 = vmatprep.mubr.f32.mxu0 0.0
      %415 = vmatmul.mubr.f32.gmra.mxu0 %v311
      %v416 = vpop.f32.mrf.mxu0
      %v417 = vadd.f32 %v289, %v416
      %v418 = vpop.f32.mrf.mxu0
      %419 = vmatprep.mubr.f32.mxu0 0.0
      %420 = vmatmul.mubr.f32.gmra.mxu0 %v314
      %v421 = vpop.f32.mrf.mxu0
      %v422 = vadd.f32 %v289, %v421
      %v423 = vpop.f32.mrf.mxu0
      %424 = vdwg.mxu0
      %v425 = vld [vmem:[%s258] sm:$0xff]
      %v426 = vld [vmem:[%s258 + $0x8] sm:$0xff]
      %v427 = vld [vmem:[%s258 + $0x10] sm:$0xff]
      %v428 = vld [vmem:[%s258 + $0x18] sm:$0xff]
      %v429 = vld [vmem:[%s258 + $0x20] sm:$0xff]
      %v430 = vld [vmem:[%s258 + $0x28] sm:$0xff]
      %v431 = vld [vmem:[%s258 + $0x30] sm:$0xff]
      %v432 = vld [vmem:[%s258 + $0x38] sm:$0xff]
      %v433 = vadd.f32 %v387, %v425
      %v434 = vadd.f32 %v392, %v426
      %v435 = vadd.f32 %v397, %v427
      %v436 = vadd.f32 %v402, %v428
      %v437 = vadd.f32 %v407, %v429
      %v438 = vadd.f32 %v412, %v430
      %v439 = vadd.f32 %v417, %v431
      %v440 = vadd.f32 %v422, %v432
      %v441 = vmax.f32 %v433, 0.0
      %v442 = vmax.f32 %v434, 0.0
      %v443 = vmax.f32 %v435, 0.0
      %v444 = vmax.f32 %v436, 0.0
      %v445 = vmax.f32 %v437, 0.0
      %v446 = vmax.f32 %v438, 0.0
      %v447 = vmax.f32 %v439, 0.0
      %v448 = vmax.f32 %v440, 0.0
      %v449 = vld [vmem:[%s264] sm:$0xff]
      %v450 = vld [vmem:[%s264 + $0x8] sm:$0xff]
      %v451 = vld [vmem:[%s264 + $0x10] sm:$0xff]
      %v452 = vld [vmem:[%s264 + $0x18] sm:$0xff]
      %v453 = vld [vmem:[%s264 + $0x20] sm:$0xff]
      %v454 = vld [vmem:[%s264 + $0x28] sm:$0xff]
      %v455 = vld [vmem:[%s264 + $0x30] sm:$0xff]
      %v456 = vld [vmem:[%s264 + $0x38] sm:$0xff]
      %v457 = vadd.f32 %v441, %v449
      %v458 = vadd.f32 %v442, %v450
      %v459 = vadd.f32 %v443, %v451
      %v460 = vadd.f32 %v444, %v452
      %v461 = vadd.f32 %v445, %v453
      %v462 = vadd.f32 %v446, %v454
      %v463 = vadd.f32 %v447, %v455
      %v464 = vadd.f32 %v448, %v456
      %vm465 = vcmask 162816
      %466 = vst.msk [vmem:[%s270] sm:$0xff] %vm465, %v457
      %467 = vst.msk [vmem:[%s270 + $0x8] sm:$0xff] %vm465, %v458
      %468 = vst.msk [vmem:[%s270 + $0x10] sm:$0xff] %vm465, %v459
      %469 = vst.msk [vmem:[%s270 + $0x18] sm:$0xff] %vm465, %v460
      %470 = vst.msk [vmem:[%s270 + $0x20] sm:$0xff] %vm465, %v461
      %471 = vst.msk [vmem:[%s270 + $0x28] sm:$0xff] %vm465, %v462
      %472 = vst.msk [vmem:[%s270 + $0x30] sm:$0xff] %vm465, %v463
      %473 = vst.msk [vmem:[%s270 + $0x38] sm:$0xff] %vm465, %v464
      %s474 = smul.u32 8, %s16
      %p475 = scmp.lt.s32.totalorder %s474, 31
      %s476 = scalar_select %p475, %s474, 31
      %s477 = smul.addr %s476, 8
      %s478 = scalar_lea.vmem %s5, %s477
      // Predicated region
      $region41: #{tpu_custom_call.1} parent=39 // pred_check
        %p479 = pneg %p154
      $region42: #{tpu_custom_call.1} parent=39 // pred_check_branch
        %481 = sbr.rel (%p479) target = $region44
      $region43: #{tpu_custom_call.1} parent=39 // pred_region
        %s482 = smul.u32 8, %s16
      $region44: #{tpu_custom_call.1} parent=39 // pred_fallthru
        _
    $region40: #{tpu_custom_call.1} parent=5 // pred_fallthru
      _
    %p483 = scmp.le.s32.totalorder 2, %s11
    // Predicated region
    $region45: #{tpu_custom_call.1} parent=5 // pred_check
      %p484 = pneg %p483
    $region46: #{tpu_custom_call.1} parent=5 // pred_check_branch
      %486 = sbr.rel (%p484) target = $region48
    $region47: #{tpu_custom_call.1} parent=5 // pred_region
      %s487 = ssub.s32 %s11, 2
      // Predicated region
      $region49: #{tpu_custom_call.1} parent=47 // pred_check
        %p488 = pneg %p160
      $region50: #{tpu_custom_call.1} parent=47 // pred_check_branch
        %490 = sbr.rel (%p488) target = $region52
      $region51: #{tpu_custom_call.1} parent=47 // pred_region
        %s491 = smul.u32 8, %s17
        %p492 = scmp.lt.s32.totalorder %s491, 31
        %s493 = scalar_select %p492, %s491, 31
        %s494 = smul.addr %s493, 8
        %s495 = scalar_lea.vmem %s5, %s494
      $region52: #{tpu_custom_call.1} parent=47 // pred_fallthru
        _
    $region48: #{tpu_custom_call.1} parent=5 // pred_fallthru
      _
  $region6: #{tpu_custom_call.1} parent=0 // loop_footer
    %s15 = sadd.s32 1, %s11
  $region7: #{tpu_custom_call.1} parent=0 // loop_footer_branch
    %10 = sbr.rel target = $region3
  $region8: #{tpu_custom_call.1} parent=0 // loop_exit
    _

</llo_original>
